<compile_context>
chip_gen: v6e
topology: v6e:2x2x1
jax: 0.10.0
libtpu: 0.0.40
codegen_flags: <defaults>
</compile_context>

<pallas_src>
import functools

import jax
import jax.numpy as jnp
from jax.experimental import pallas as pl
from jax.experimental.pallas import tpu as pltpu

_MIB = 1024 * 1024


def _round_up(a, b):
    return ((a + b - 1) // b) * b


def _cdiv(a, b):
    return (a + b - 1) // b


# ---------------------------------------------------------------------------
# kernels
# ---------------------------------------------------------------------------
def _layernorm_rows(y, gamma, beta, *, eps, inv_e):
    """Row-wise LayerNorm in f32.

    Two-pass variance ((y - mean)^2): after the residual add the per-row mean
    can dominate and E[y^2] - mean^2 loses bits to cancellation; the block is
    VMEM-resident so the extra traversal is cheap VPU work.
    """
    mean = jnp.sum(y, axis=-1, keepdims=True) * inv_e
    c = y - mean
    var = jnp.sum(c * c, axis=-1, keepdims=True) * inv_e
    y_hat = c * jax.lax.rsqrt(var + eps)
    return y_hat * gamma + beta


def ffn_resident_kernel(x_ref, w1_ref, b1_ref, w2_ref, b2_ref, g_ref, beta_ref,
                        o_ref, *, eps, inv_e, matmul_dtype):
    # grid = (row_tiles,). w1/w2 have grid-invariant index_maps, so they are
    # DMA'd HBM->VMEM only once per call (no per-row-tile re-streaming).
    x = x_ref[...]                                     # already matmul_dtype
    h = jnp.dot(x, w1_ref[...], preferred_element_type=jnp.float32)
    h = jnp.maximum(h + b1_ref[...].astype(jnp.float32), 0.0)
    out = jnp.dot(h.astype(matmul_dtype), w2_ref[...],
                  preferred_element_type=jnp.float32)
    y = out + b2_ref[...].astype(jnp.float32) + x.astype(jnp.float32)  # residual
    o_ref[...] = _layernorm_rows(
        y, g_ref[...].astype(jnp.float32), beta_ref[...].astype(jnp.float32),
        eps=eps, inv_e=inv_e).astype(o_ref.dtype)


def ffn_tiled_kernel(x_ref, w1_ref, b1_ref, w2_ref, b2_ref, g_ref, beta_ref,
                     o_ref, acc_ref, *, eps, inv_e, matmul_dtype):
    # grid = (row_tiles [parallel], h_tiles [arbitrary, innermost reduction])
    hk = pl.program_id(1)

    @pl.when(hk == 0)
    def _init():
        acc_ref[...] = jnp.zeros_like(acc_ref)

    x = x_ref[...]                                     # already matmul_dtype
    h = jnp.dot(x, w1_ref[...], preferred_element_type=jnp.float32)
    h = jnp.maximum(h + b1_ref[...].astype(jnp.float32), 0.0)
    acc_ref[...] += jnp.dot(h.astype(matmul_dtype), w2_ref[...],
                            preferred_element_type=jnp.float32)

    @pl.when(hk == pl.num_programs(1) - 1)
    def _finalize():
        y = acc_ref[...] + b2_ref[...].astype(jnp.float32) + x.astype(jnp.float32)
        o_ref[...] = _layernorm_rows(
            y, g_ref[...].astype(jnp.float32), beta_ref[...].astype(jnp.float32),
            eps=eps, inv_e=inv_e).astype(o_ref.dtype)


# ---------------------------------------------------------------------------
# wrapper
# ---------------------------------------------------------------------------
def feed_forward_pallas(x, w1, b1, w2, b2, gamma, beta, *,
                        eps=1e-6,
                        tile_m=512,            # row tile (see review: >=512 on v6e)
                        tile_h=512,            # hidden/reduction tile (tiled path)
                        matmul_dtype=jnp.bfloat16,
                        vmem_budget_bytes=48 * _MIB,   # fits v7x 64 MiB w/ headroom
                        force_tiled=False,
                        single_buffer_x_out=False,     # set True on v7x for big E
                        extra_weight_buffering=False,  # Buffered(3) weights (v5e/v6e)
                        vmem_limit_bytes=None):
    """Fused Linear->ReLU->Linear + residual + post-LayerNorm (dropout=0)."""
    B, S, E = x.shape
    H = w1.shape[1]
    M = B * S
    out_dtype = x.dtype

    mm = jnp.dtype(matmul_dtype)
    x2d = x.reshape(M, E)                       # free row-major reshape
    if x2d.dtype != mm:
        # Single cast in the wrapper; the residual is taken from this same
        # block inside the kernel (avoids a second f32 x stream).
        x2d = x2d.astype(mm)
    # TODO(synk): in production store w1/w2 in matmul_dtype so these per-call
    # casts (a full weight read+write in HBM) disappear entirely.
    w1c = w1 if w1.dtype == mm else w1.astype(mm)
    w2c = w2 if w2.dtype == mm else w2.astype(mm)

    itm = mm.itemsize
    oitm = jnp.dtype(out_dtype).itemsize
    param_bytes = 4 * (b1.size + b2.size + gamma.size + beta.size)
    w_total_bytes = (w1c.size + w2c.size) * itm

    # ---- row tile -------------------------------------------------------
    tm = _round_up(min(tile_m, _round_up(M, 8)), 8)
    # v7x has 2 TensorCores: make sure the parallel row axis has >= 2 tiles so
    # both cores get work (no-op on single-TC v5e/v6e).
    if _cdiv(M, tm) < 2 and M > 8:
        tm = _round_up(_cdiv(M, 2), 8)

    def row_block_bytes(tm_, with_acc, nbuf_xo):
        b = nbuf_xo * tm_ * E * itm + nbuf_xo * tm_ * E * oitm   # x, out blocks
        if with_acc:
            b += tm_ * E * 4                                     # f32 accumulator
        return b

    # ---- weights-resident fast path? ------------------------------------
    fast_bytes = (row_block_bytes(tm, with_acc=False, nbuf_xo=2)
                  + 2 * w_total_bytes + 2 * param_bytes)
    use_fast = (not force_tiled) and fast_bytes <= vmem_budget_bytes

    if use_fast:
        grid = (_cdiv(M, tm),)
        in_specs = [
            pl.BlockSpec((tm, E), lambda i: (i, 0)),    # x (matmul + residual)
            pl.BlockSpec((E, H), lambda i: (0, 0)),     # w1, whole, fetched once
            pl.BlockSpec((1, H), lambda i: (0, 0)),     # b1
            pl.BlockSpec((H, E), lambda i: (0, 0)),     # w2, whole, fetched once
            pl.BlockSpec((1, E), lambda i: (0, 0)),     # b2
            pl.BlockSpec((1, E), lambda i: (0, 0)),     # LN gamma
            pl.BlockSpec((1, E), lambda i: (0, 0)),     # LN beta
        ]
        out_spec = pl.BlockSpec((tm, E), lambda i: (i, 0))
        scratch = []
        kernel = functools.partial(ffn_resident_kernel, eps=eps, inv_e=1.0 / E,
                                   matmul_dtype=matmul_dtype)
        dim_sem = ("parallel",)
        w_stream_bytes = w_total_bytes              # streamed from HBM once
        footprint = fast_bytes
    else:
        # ---- H-split reduction path -------------------------------------
        nbuf_xo = 1 if single_buffer_x_out else 2
        nbuf_w = 3 if extra_weight_buffering else 2

        def chunk_bytes(tm_, th_):
            return (row_block_bytes(tm_, with_acc=True, nbuf_xo=nbuf_xo)
                    + nbuf_w * 2 * E * th_ * itm     # w1 + w2 chunks
                    + 2 * param_bytes)

        # th must divide H exactly (contraction axis: edge-block garbage would
        # pollute the accumulator) and be a multiple of 128 when possible.
        if H % 128 == 0:
            th = max(min((tile_h // 128) * 128, H), 128)
            while H % th != 0 or (chunk_bytes(tm, th) > vmem_budget_bytes and th > 128):
                th -= 128
        else:
            th = H                                   # loud fallback, checked below
        while chunk_bytes(tm, th) > vmem_budget_bytes and tm > 8:
            tm = _round_up(max(8, tm // 2), 8)
        if chunk_bytes(tm, th) > vmem_budget_bytes:
            raise ValueError(
                f"Feed_Forward pallas kernel cannot fit VMEM budget "
                f"{vmem_budget_bytes} bytes (E={E}, H={H}, tm={tm}, th={th}); "
                f"H not a multiple of 128 or budget too small.")

        def xo_spec(index_map):
            # x/out only change per outer row tile: single-buffering them (on
            # v7x) exposes just one DMA latency per row tile while keeping the
            # weights (the dominant streaming traffic) double-buffered.
            if single_buffer_x_out:
                return pl.BlockSpec((tm, E), index_map, pipeline_mode=pl.Buffered(1))
            return pl.BlockSpec((tm, E), index_map)

        w_kwargs = ({"pipeline_mode": pl.Buffered(3)} if extra_weight_buffering else {})
        grid = (_cdiv(M, tm), _cdiv(H, th))
        in_specs = [
            xo_spec(lambda i, k: (i, 0)),                              # x
            pl.BlockSpec((E, th), lambda i, k: (0, k), **w_kwargs),    # w1 chunk
            pl.BlockSpec((1, th), lambda i, k: (0, k)),                # b1 chunk
            pl.BlockSpec((th, E), lambda i, k: (k, 0), **w_kwargs),    # w2 chunk
            pl.BlockSpec((1, E), lambda i, k: (0, 0)),                 # b2
            pl.BlockSpec((1, E), lambda i, k: (0, 0)),                 # LN gamma
            pl.BlockSpec((1, E), lambda i, k: (0, 0)),                 # LN beta
        ]
        out_spec = xo_spec(lambda i, k: (i, 0))
        scratch = [pltpu.VMEM((tm, E), jnp.float32)]
        kernel = functools.partial(ffn_tiled_kernel, eps=eps, inv_e=1.0 / E,
                                   matmul_dtype=matmul_dtype)
        dim_sem = ("parallel", "arbitrary")
        # weights are re-streamed from HBM once per row tile
        w_stream_bytes = _cdiv(M, tm) * w_total_bytes
        footprint = chunk_bytes(tm, th)

    bytes_accessed = int(x2d.size * itm + M * E * oitm
                         + w_stream_bytes + param_bytes)
    cost = pl.CostEstimate(flops=int(4 * M * E * H + 10 * M * E),
                           transcendentals=int(M),
                           bytes_accessed=bytes_accessed)

    if vmem_limit_bytes is None:
        # explicit scoped-VMEM limit derived from the chosen block shapes
        # (+25% headroom for compiler internal scratch), never below 32 MiB.
        vmem_limit_bytes = int(min(112 * _MIB, max(32 * _MIB, footprint * 1.25)))

    out2d = pl.pallas_call(
        kernel,
        out_shape=jax.ShapeDtypeStruct((M, E), out_dtype),
        grid_spec=pltpu.PrefetchScalarGridSpec(
            num_scalar_prefetch=0,
            grid=grid,
            in_specs=in_specs,
            out_specs=out_spec,
            scratch_shapes=scratch,
        ),
        compiler_params=pltpu.CompilerParams(
            dimension_semantics=dim_sem,
            vmem_limit_bytes=vmem_limit_bytes,
        ),
        cost_estimate=cost,
    )(x2d, w1c, b1, w2c, b2, gamma, beta)

    return out2d.reshape(B, S, E)


# ---------------------------------------------------------------------------
# pure-JAX reference (post_LN=True, dropout=0)
# ---------------------------------------------------------------------------
def feed_forward_ref(x, w1, b1, w2, b2, gamma, beta, eps=1e-6):
    res = x
    h = jnp.maximum(jnp.einsum("bse,eh->bsh", x, w1) + b1, 0.0)
    out = jnp.einsum("bsh,he->bse", h, w2) + b2
    y = out + res
    mean = jnp.mean(y, axis=-1, keepdims=True)
    var = jnp.mean((y - mean) ** 2, axis=-1, keepdims=True)
    return (y - mean) / jnp.sqrt(var + eps) * gamma + beta


if __name__ == "__main__":
    # Feed_Forward(emb_dim=32, dim_expan=4, post_LN=True, dropout=0)
    B, S, E = 2, 8, 32
    H = 4 * E

    key = jax.random.PRNGKey(0)
    kx, k1, kb1, k2, kb2 = jax.random.split(key, 5)

    x = jax.random.normal(kx, (B, S, E), dtype=jnp.float32)

    # deterministic init (matching nn.Linear's uniform(-1/sqrt(in), 1/sqrt(in)))
    lim1 = 1.0 / (E ** 0.5)
    lim2 = 1.0 / (H ** 0.5)
    w1 = jax.random.uniform(k1, (E, H), jnp.float32, -lim1, lim1)   # stored (in, out)
    b1 = jax.random.uniform(kb1, (1, H), jnp.float32, -lim1, lim1)
    w2 = jax.random.uniform(k2, (H, E), jnp.float32, -lim2, lim2)
    b2 = jax.random.uniform(kb2, (1, E), jnp.float32, -lim2, lim2)
    gamma = jnp.ones((1, E), jnp.float32)   # LayerNorm weight
    beta = jnp.zeros((1, E), jnp.float32)   # LayerNorm bias

    ref = feed_forward_ref(x, w1, b1, w2, b2, gamma, beta)

    # 1) weights-resident fast path, f32 MXU: exact check against f32 reference.
    out_f32 = feed_forward_pallas(x, w1, b1, w2, b2, gamma, beta,
                                  matmul_dtype=jnp.float32)
    out_f32 = jax.block_until_ready(out_f32)
    assert out_f32.shape == (B, S, E)
    assert jnp.allclose(out_f32, ref, atol=1e-4, rtol=1e-4), "f32 fast path mismatch"

    # 2) default bf16 MXU path (production config): looser tolerance
    #    (x / weights / residual quantized to bf16).
    out_bf16 = jax.block_until_ready(
        feed_forward_pallas(x, w1, b1, w2, b2, gamma, beta))
    assert jnp.allclose(out_bf16, ref, atol=5e-2, rtol=5e-2), "bf16 path mismatch"

    # 3) tiled (H-split) reduction path with multiple k steps and >1 row tile,
    #    f32 for a tight check of the accumulator + epilogue logic.
    E2, H2 = 128, 512
    kx2, k12, kb12, k22, kb22 = jax.random.split(jax.random.PRNGKey(0), 5)
    x2 = jax.random.normal(kx2, (B, S, E2), dtype=jnp.float32)
    l1, l2 = 1.0 / (E2 ** 0.5), 1.0 / (H2 ** 0.5)
    w1b = jax.random.uniform(k12, (E2, H2), jnp.float32, -l1, l1)
    b1b = jax.random.uniform(kb12, (1, H2), jnp.float32, -l1, l1)
    w2b = jax.random.uniform(k22, (H2, E2), jnp.float32, -l2, l2)
    b2b = jax.random.uniform(kb22, (1, E2), jnp.float32, -l2, l2)
    g2 = jnp.ones((1, E2), jnp.float32)
    be2 = jnp.zeros((1, E2), jnp.float32)
    ref2 = feed_forward_ref(x2, w1b, b1b, w2b, b2b, g2, be2)
    out_tiled = jax.block_until_ready(
        feed_forward_pallas(x2, w1b, b1b, w2b, b2b, g2, be2,
                            matmul_dtype=jnp.float32,
                            force_tiled=True, tile_h=128))
    assert jnp.allclose(out_tiled, ref2, atol=1e-3, rtol=1e-3), "tiled path mismatch"

    print("KERNEL_OK")
</pallas_src>

<mosaic_0001>
module attributes {stable_mosaic.version = 11 : i64} {
  func.func @ffn_resident_kernel(%arg0: i32, %arg1: memref<8x32xf32, #tpu.memory_space<vmem>>, %arg2: memref<32x128xf32, #tpu.memory_space<vmem>>, %arg3: memref<1x128xf32, #tpu.memory_space<vmem>>, %arg4: memref<128x32xf32, #tpu.memory_space<vmem>>, %arg5: memref<1x32xf32, #tpu.memory_space<vmem>>, %arg6: memref<1x32xf32, #tpu.memory_space<vmem>>, %arg7: memref<1x32xf32, #tpu.memory_space<vmem>>, %arg8: memref<8x32xf32, #tpu.memory_space<vmem>>) attributes {dimension_semantics = [#tpu.dimension_semantics<parallel>], iteration_bounds = array<i64: 2>, scalar_prefetch = 0 : i64, scratch_operands = 0 : i64, tpu.core_type = #tpu.core_type<tc>, window_params = [{transform_indices = @transform_0, window_bounds = array<i64: 8, 32>}, {pipeline_mode = #tpu.pipeline_mode<synchronous>, transform_indices = @transform_1, window_bounds = array<i64: 32, 128>}, {pipeline_mode = #tpu.pipeline_mode<synchronous>, transform_indices = @transform_2, window_bounds = array<i64: 1, 128>}, {pipeline_mode = #tpu.pipeline_mode<synchronous>, transform_indices = @transform_3, window_bounds = array<i64: 128, 32>}, {pipeline_mode = #tpu.pipeline_mode<synchronous>, transform_indices = @transform_4, window_bounds = array<i64: 1, 32>}, {pipeline_mode = #tpu.pipeline_mode<synchronous>, transform_indices = @transform_5, window_bounds = array<i64: 1, 32>}, {pipeline_mode = #tpu.pipeline_mode<synchronous>, transform_indices = @transform_6, window_bounds = array<i64: 1, 32>}, {transform_indices = @transform_7, window_bounds = array<i64: 8, 32>}]} {
    %c0 = arith.constant 0 : index
    %c0_0 = arith.constant 0 : index
    %0 = vector.load %arg1[%c0, %c0_0] : memref<8x32xf32, #tpu.memory_space<vmem>>, vector<8x32xf32>
    %c0_1 = arith.constant 0 : index
    %c0_2 = arith.constant 0 : index
    %1 = vector.load %arg2[%c0_1, %c0_2] : memref<32x128xf32, #tpu.memory_space<vmem>>, vector<32x128xf32>
    %cst = arith.constant dense<0.000000e+00> : vector<8x128xf32>
    %2 = tpu.matmul %0, %1, %cst {dimension_numbers = #tpu.dot_dimension_numbers<[1], [0], [0], [1], [0, 0, 1, 1], [], []>} : vector<8x32xf32>, vector<32x128xf32>, vector<8x128xf32> -> vector<8x128xf32>
    %c0_3 = arith.constant 0 : index
    %c0_4 = arith.constant 0 : index
    %3 = vector.load %arg3[%c0_3, %c0_4] : memref<1x128xf32, #tpu.memory_space<vmem>>, vector<1x128xf32>
    %4 = vector.broadcast %3 : vector<1x128xf32> to vector<8x128xf32>
    %5 = arith.addf %2, %4 : vector<8x128xf32>
    %cst_5 = arith.constant 0.000000e+00 : f32
    %6 = vector.broadcast %cst_5 : f32 to vector<8x128xf32>
    %7 = arith.maximumf %5, %6 : vector<8x128xf32>
    %c0_6 = arith.constant 0 : index
    %c0_7 = arith.constant 0 : index
    %8 = vector.load %arg4[%c0_6, %c0_7] : memref<128x32xf32, #tpu.memory_space<vmem>>, vector<128x32xf32>
    %cst_8 = arith.constant dense<0.000000e+00> : vector<8x32xf32>
    %9 = tpu.matmul %7, %8, %cst_8 {dimension_numbers = #tpu.dot_dimension_numbers<[1], [0], [0], [1], [0, 0, 1, 1], [], []>} : vector<8x128xf32>, vector<128x32xf32>, vector<8x32xf32> -> vector<8x32xf32>
    %c0_9 = arith.constant 0 : index
    %c0_10 = arith.constant 0 : index
    %10 = vector.load %arg5[%c0_9, %c0_10] : memref<1x32xf32, #tpu.memory_space<vmem>>, vector<1x32xf32>
    %11 = vector.broadcast %10 : vector<1x32xf32> to vector<8x32xf32>
    %12 = arith.addf %9, %11 : vector<8x32xf32>
    %13 = arith.addf %12, %0 : vector<8x32xf32>
    %c0_11 = arith.constant 0 : index
    %c0_12 = arith.constant 0 : index
    %14 = vector.load %arg6[%c0_11, %c0_12] : memref<1x32xf32, #tpu.memory_space<vmem>>, vector<1x32xf32>
    %c0_13 = arith.constant 0 : index
    %c0_14 = arith.constant 0 : index
    %15 = vector.load %arg7[%c0_13, %c0_14] : memref<1x32xf32, #tpu.memory_space<vmem>>, vector<1x32xf32>
    %cst_15 = arith.constant dense<0.000000e+00> : vector<8xf32>
    %16 = vector.multi_reduction <add>, %13, %cst_15 [1] : vector<8x32xf32> to vector<8xf32>
    %17 = vector.shape_cast %16 : vector<8xf32> to vector<8x1xf32>
    %cst_16 = arith.constant 3.125000e-02 : f32
    %18 = vector.broadcast %cst_16 : f32 to vector<8x1xf32>
    %19 = arith.mulf %17, %18 : vector<8x1xf32>
    %20 = vector.broadcast %19 : vector<8x1xf32> to vector<8x32xf32>
    %21 = arith.subf %13, %20 : vector<8x32xf32>
    %22 = arith.mulf %21, %21 : vector<8x32xf32>
    %cst_17 = arith.constant dense<0.000000e+00> : vector<8xf32>
    %23 = vector.multi_reduction <add>, %22, %cst_17 [1] : vector<8x32xf32> to vector<8xf32>
    %24 = vector.shape_cast %23 : vector<8xf32> to vector<8x1xf32>
    %cst_18 = arith.constant 3.125000e-02 : f32
    %25 = vector.broadcast %cst_18 : f32 to vector<8x1xf32>
    %26 = arith.mulf %24, %25 : vector<8x1xf32>
    %cst_19 = arith.constant 9.99999997E-7 : f32
    %27 = vector.broadcast %cst_19 : f32 to vector<8x1xf32>
    %28 = arith.addf %26, %27 : vector<8x1xf32>
    %29 = math.rsqrt %28 : vector<8x1xf32>
    %30 = vector.broadcast %29 : vector<8x1xf32> to vector<8x32xf32>
    %31 = arith.mulf %21, %30 : vector<8x32xf32>
    %32 = vector.broadcast %14 : vector<1x32xf32> to vector<8x32xf32>
    %33 = arith.mulf %31, %32 : vector<8x32xf32>
    %34 = vector.broadcast %15 : vector<1x32xf32> to vector<8x32xf32>
    %35 = arith.addf %33, %34 : vector<8x32xf32>
    %c0_20 = arith.constant 0 : index
    %c0_21 = arith.constant 0 : index
    %36 = vector.load %arg8[%c0_20, %c0_21] : memref<8x32xf32, #tpu.memory_space<vmem>>, vector<8x32xf32>
    tpu.vector_store %arg8[%c0_20, %c0_21], %35 {strides = array<i32>} : memref<8x32xf32, #tpu.memory_space<vmem>>, vector<8x32xf32>,
    return
  }
  func.func @transform_0(%arg0: i32) -> (i32, i32) {
    %c0_i32 = arith.constant 0 : i32
    %c0_i32_0 = arith.constant 0 : i32
    return %arg0, %c0_i32 : i32, i32
  }
  func.func @transform_1(%arg0: i32) -> (i32, i32) {
    %c0_i32 = arith.constant 0 : i32
    %c0_i32_0 = arith.constant 0 : i32
    %c0_i32_1 = arith.constant 0 : i32
    return %c0_i32, %c0_i32_0 : i32, i32
  }
  func.func @transform_2(%arg0: i32) -> (i32, i32) {
    %c0_i32 = arith.constant 0 : i32
    %c0_i32_0 = arith.constant 0 : i32
    %c0_i32_1 = arith.constant 0 : i32
    return %c0_i32, %c0_i32_0 : i32, i32
  }
  func.func @transform_3(%arg0: i32) -> (i32, i32) {
    %c0_i32 = arith.constant 0 : i32
    %c0_i32_0 = arith.constant 0 : i32
    %c0_i32_1 = arith.constant 0 : i32
    return %c0_i32, %c0_i32_0 : i32, i32
  }
  func.func @transform_4(%arg0: i32) -> (i32, i32) {
    %c0_i32 = arith.constant 0 : i32
    %c0_i32_0 = arith.constant 0 : i32
    %c0_i32_1 = arith.constant 0 : i32
    return %c0_i32, %c0_i32_0 : i32, i32
  }
  func.func @transform_5(%arg0: i32) -> (i32, i32) {
    %c0_i32 = arith.constant 0 : i32
    %c0_i32_0 = arith.constant 0 : i32
    %c0_i32_1 = arith.constant 0 : i32
    return %c0_i32, %c0_i32_0 : i32, i32
  }
  func.func @transform_6(%arg0: i32) -> (i32, i32) {
    %c0_i32 = arith.constant 0 : i32
    %c0_i32_0 = arith.constant 0 : i32
    %c0_i32_1 = arith.constant 0 : i32
    return %c0_i32, %c0_i32_0 : i32, i32
  }
  func.func @transform_7(%arg0: i32) -> (i32, i32) {
    %c0_i32 = arith.constant 0 : i32
    %c0_i32_0 = arith.constant 0 : i32
    return %arg0, %c0_i32 : i32, i32
  }
}

</mosaic_0001>

<llo_original>
// kernel: tpu_custom_call.1
$region0: #{tpu_custom_call.1}
  #allocation0 [shape = 'u32[]', space=smem, size = 0x4, offset = 0x4, fixed_abs, tag = 'smem constant byte address 0x4 - core index']
  #allocation1 [shape = 'u32[144,128]{1,0:T(1,128)}', space=vmem, size = 0x12000, scoped, tag = 'internal scratch']
  %s0 = inlined_call_operand.vmem [shape: f32[16,32], index: 0, kind: input, shape index: {}]
  %s1 = inlined_call_operand.vmem [shape: f32[32,128], index: 1, kind: input, shape index: {}]
  %s2 = inlined_call_operand.vmem [shape: f32[1,128], index: 2, kind: input, shape index: {}]
  %s3 = inlined_call_operand.vmem [shape: f32[128,32], index: 3, kind: input, shape index: {}]
  %s4 = inlined_call_operand.vmem [shape: f32[1,32], index: 4, kind: input, shape index: {}]
  %s5 = inlined_call_operand.vmem [shape: f32[1,32], index: 5, kind: input, shape index: {}]
  %s6 = inlined_call_operand.vmem [shape: f32[1,32], index: 6, kind: input, shape index: {}]
  %s7 = inlined_call_operand.hbm [shape: f32[16,32], index: 7, kind: output, shape index: {}]
  %s8 = sld [smem:[#allocation0]]
  $region61: #{tpu_custom_call.1} parent=0
    _
  %s10 = ssub.s32 1, %s8
  %s11 = scalar_select 0, %s10, %s8
  $region1: #{tpu_custom_call.1} parent=0
    #allocation2 [shape = 'u8[8192]{0}', space=vmem, size = 0x2000, scoped, tag = 'output window, operand 0']
    #allocation3 [shape = 's32[2]{0}', space=sflag, size = 0x8, scoped, tag = 'scoped memory for tpu_custom_call.1']
    %12 = vsyncpa [#allocation3], 0
    %s13 = scalar_lea.sflag [#allocation3], 1
    %14 = vsyncpa %s13, 0
    loop: start=0, step=1, limit=4
    $region2: #{tpu_custom_call.1} parent=1 // loop_pre_header
      _
    $region3: #{tpu_custom_call.1} parent=1 // loop_header
      %s16 = sphi 0, %s20
      %p17 = scmp.ge.s32.totalorder %s16, 4
      %s26 = sphi 0, %s28
      %s29 = sphi 0, %s26
      %s30 = sphi 0, %s29
      %s46 = sphi 0, %s30
      %s50 = sphi 0, %s50
      %s52 = sphi 0, %s50
      %s53 = sphi 0, %s52
      %s67 = sphi 0, %s53
      %s71 = sphi 0, %s71
      %s73 = sphi 0, %s71
      %s74 = sphi 0, %s73
      %s88 = sphi 0, %s74
      %s92 = sphi 0, %s92
      %s94 = sphi 0, %s92
      %s95 = sphi 0, %s94
      %s109 = sphi 0, %s95
      %s113 = sphi 0, %s113
      %s115 = sphi 0, %s113
      %s116 = sphi 0, %s115
      %s130 = sphi 0, %s116
      %s134 = sphi 0, %s134
      %s136 = sphi 0, %s134
      %s137 = sphi 0, %s136
      %s151 = sphi 0, %s137
      %s155 = sphi 0, %s155
      %s157 = sphi 0, %s155
      %s158 = sphi 0, %s157
      %s172 = sphi 0, %s158
      %s178 = sphi 0, %s180
      %s181 = sphi 0, %s178
      %s182 = sphi 0, %s181
      %s198 = sphi 0, %s182
    $region4: #{tpu_custom_call.1} parent=1 // loop_header_branch
      %19 = sbr.rel (%p17) target = $region8
    $region5: #{tpu_custom_call.1} parent=1 // loop_body
      %s21 = ssub.s32 %s16, 1
      %s22 = ssub.s32 %s16, 2
      %s23 = sadd.s32 %s16, 1
      %s24 = ssub.s32 %s16, %s23
      %p25 = scmp.eq.s32.totalorder %s24, 0
      %s27 = sadd.s32 %s26, 1
      %s28 = scalar_select %p25, %s26, %s27
      %p31 = pneg %p25
      %p32 = scmp.eq.s32.totalorder %s16, 1
      %p33 = por %p31, %p32
      %p34 = scmp.ne.s32.totalorder %s26, %s29
      %p35 = scmp.eq.s32.totalorder %s16, 0
      %p36 = por %p34, %p35
      %p37 = scmp.ne.s32.totalorder %s26, %s29
      %p38 = scmp.eq.s32.totalorder %s21, 1
      %p39 = por %p37, %p38
      %p40 = scmp.ne.s32.totalorder %s29, %s30
      %p41 = scmp.eq.s32.totalorder %s21, 0
      %p42 = por %p40, %p41
      %p43 = scmp.ne.s32.totalorder %s29, %s30
      %p44 = scmp.eq.s32.totalorder %s22, 1
      %p45 = por %p43, %p44
      %p47 = scmp.ne.s32.totalorder %s30, %s46
      %p48 = scmp.eq.s32.totalorder %s22, 0
      %p49 = por %p47, %p48
      %s51 = sadd.s32 %s50, 1
      %p54 = scmp.eq.s32.totalorder %s16, 1
      %p55 = scmp.ne.s32.totalorder %s50, %s52
      %p56 = scmp.eq.s32.totalorder %s16, 0
      %p57 = por %p55, %p56
      %p58 = scmp.ne.s32.totalorder %s50, %s52
      %p59 = scmp.eq.s32.totalorder %s21, 1
      %p60 = por %p58, %p59
      %p61 = scmp.ne.s32.totalorder %s52, %s53
      %p62 = scmp.eq.s32.totalorder %s21, 0
      %p63 = por %p61, %p62
      %p64 = scmp.ne.s32.totalorder %s52, %s53
      %p65 = scmp.eq.s32.totalorder %s22, 1
      %p66 = por %p64, %p65
      %p68 = scmp.ne.s32.totalorder %s53, %s67
      %p69 = scmp.eq.s32.totalorder %s22, 0
      %p70 = por %p68, %p69
      %s72 = sadd.s32 %s71, 1
      %p75 = scmp.eq.s32.totalorder %s16, 1
      %p76 = scmp.ne.s32.totalorder %s71, %s73
      %p77 = scmp.eq.s32.totalorder %s16, 0
      %p78 = por %p76, %p77
      %p79 = scmp.ne.s32.totalorder %s71, %s73
      %p80 = scmp.eq.s32.totalorder %s21, 1
      %p81 = por %p79, %p80
      %p82 = scmp.ne.s32.totalorder %s73, %s74
      %p83 = scmp.eq.s32.totalorder %s21, 0
      %p84 = por %p82, %p83
      %p85 = scmp.ne.s32.totalorder %s73, %s74
      %p86 = scmp.eq.s32.totalorder %s22, 1
      %p87 = por %p85, %p86
      %p89 = scmp.ne.s32.totalorder %s74, %s88
      %p90 = scmp.eq.s32.totalorder %s22, 0
      %p91 = por %p89, %p90
      %s93 = sadd.s32 %s92, 1
      %p96 = scmp.eq.s32.totalorder %s16, 1
      %p97 = scmp.ne.s32.totalorder %s92, %s94
      %p98 = scmp.eq.s32.totalorder %s16, 0
      %p99 = por %p97, %p98
      %p100 = scmp.ne.s32.totalorder %s92, %s94
      %p101 = scmp.eq.s32.totalorder %s21, 1
      %p102 = por %p100, %p101
      %p103 = scmp.ne.s32.totalorder %s94, %s95
      %p104 = scmp.eq.s32.totalorder %s21, 0
      %p105 = por %p103, %p104
      %p106 = scmp.ne.s32.totalorder %s94, %s95
      %p107 = scmp.eq.s32.totalorder %s22, 1
      %p108 = por %p106, %p107
      %p110 = scmp.ne.s32.totalorder %s95, %s109
      %p111 = scmp.eq.s32.totalorder %s22, 0
      %p112 = por %p110, %p111
      %s114 = sadd.s32 %s113, 1
      %p117 = scmp.eq.s32.totalorder %s16, 1
      %p118 = scmp.ne.s32.totalorder %s113, %s115
      %p119 = scmp.eq.s32.totalorder %s16, 0
      %p120 = por %p118, %p119
      %p121 = scmp.ne.s32.totalorder %s113, %s115
      %p122 = scmp.eq.s32.totalorder %s21, 1
      %p123 = por %p121, %p122
      %p124 = scmp.ne.s32.totalorder %s115, %s116
      %p125 = scmp.eq.s32.totalorder %s21, 0
      %p126 = por %p124, %p125
      %p127 = scmp.ne.s32.totalorder %s115, %s116
      %p128 = scmp.eq.s32.totalorder %s22, 1
      %p129 = por %p127, %p128
      %p131 = scmp.ne.s32.totalorder %s116, %s130
      %p132 = scmp.eq.s32.totalorder %s22, 0
      %p133 = por %p131, %p132
      %s135 = sadd.s32 %s134, 1
      %p138 = scmp.eq.s32.totalorder %s16, 1
      %p139 = scmp.ne.s32.totalorder %s134, %s136
      %p140 = scmp.eq.s32.totalorder %s16, 0
      %p141 = por %p139, %p140
      %p142 = scmp.ne.s32.totalorder %s134, %s136
      %p143 = scmp.eq.s32.totalorder %s21, 1
      %p144 = por %p142, %p143
      %p145 = scmp.ne.s32.totalorder %s136, %s137
      %p146 = scmp.eq.s32.totalorder %s21, 0
      %p147 = por %p145, %p146
      %p148 = scmp.ne.s32.totalorder %s136, %s137
      %p149 = scmp.eq.s32.totalorder %s22, 1
      %p150 = por %p148, %p149
      %p152 = scmp.ne.s32.totalorder %s137, %s151
      %p153 = scmp.eq.s32.totalorder %s22, 0
      %p154 = por %p152, %p153
      %s156 = sadd.s32 %s155, 1
      %p159 = scmp.eq.s32.totalorder %s16, 1
      %p160 = scmp.ne.s32.totalorder %s155, %s157
      %p161 = scmp.eq.s32.totalorder %s16, 0
      %p162 = por %p160, %p161
      %p163 = scmp.ne.s32.totalorder %s155, %s157
      %p164 = scmp.eq.s32.totalorder %s21, 1
      %p165 = por %p163, %p164
      %p166 = scmp.ne.s32.totalorder %s157, %s158
      %p167 = scmp.eq.s32.totalorder %s21, 0
      %p168 = por %p166, %p167
      %p169 = scmp.ne.s32.totalorder %s157, %s158
      %p170 = scmp.eq.s32.totalorder %s22, 1
      %p171 = por %p169, %p170
      %p173 = scmp.ne.s32.totalorder %s158, %s172
      %p174 = scmp.eq.s32.totalorder %s22, 0
      %p175 = por %p173, %p174
      %s176 = ssub.s32 %s16, %s23
      %p177 = scmp.eq.s32.totalorder %s176, 0
      %s179 = sadd.s32 %s178, 1
      %s180 = scalar_select %p177, %s178, %s179
      %p183 = pneg %p177
      %p184 = scmp.eq.s32.totalorder %s16, 1
      %p185 = por %p183, %p184
      %p186 = scmp.ne.s32.totalorder %s178, %s181
      %p187 = scmp.eq.s32.totalorder %s16, 0
      %p188 = por %p186, %p187
      %p189 = scmp.ne.s32.totalorder %s178, %s181
      %p190 = scmp.eq.s32.totalorder %s21, 1
      %p191 = por %p189, %p190
      %p192 = scmp.ne.s32.totalorder %s181, %s182
      %p193 = scmp.eq.s32.totalorder %s21, 0
      %p194 = por %p192, %p193
      %p195 = scmp.ne.s32.totalorder %s181, %s182
      %p196 = scmp.eq.s32.totalorder %s22, 1
      %p197 = por %p195, %p196
      %p199 = scmp.ne.s32.totalorder %s182, %s198
      %p200 = scmp.eq.s32.totalorder %s22, 0
      %p201 = por %p199, %p200
      %p202 = scmp.le.s32.totalorder 1, %s16
      %p203 = scmp.lt.s32.totalorder %s16, 3
      %p204 = pnand %p202, %p203
      %p205 = pneg %p204
      // Predicated region
      $region9: #{tpu_custom_call.1} parent=5 // pred_check
        _
      $region10: #{tpu_custom_call.1} parent=5 // pred_check_branch
        %207 = sbr.rel (%p204) target = $region12
      $region11: #{tpu_custom_call.1} parent=5 // pred_region
        %s208 = ssub.s32 %s16, 1
        // Predicated region
        $region13: #{tpu_custom_call.1} parent=11 // pred_check
          %p209 = pneg %p63
        $region14: #{tpu_custom_call.1} parent=11 // pred_check_branch
          %211 = sbr.rel (%p209) target = $region16
        $region15: #{tpu_custom_call.1} parent=11 // pred_region
          _
        $region16: #{tpu_custom_call.1} parent=11 // pred_fallthru
          _
        // Predicated region
        $region17: #{tpu_custom_call.1} parent=11 // pred_check
          %p212 = pneg %p84
        $region18: #{tpu_custom_call.1} parent=11 // pred_check_branch
          %214 = sbr.rel (%p212) target = $region20
        $region19: #{tpu_custom_call.1} parent=11 // pred_region
          _
        $region20: #{tpu_custom_call.1} parent=11 // pred_fallthru
          _
        // Predicated region
        $region21: #{tpu_custom_call.1} parent=11 // pred_check
          %p215 = pneg %p105
        $region22: #{tpu_custom_call.1} parent=11 // pred_check_branch
          %217 = sbr.rel (%p215) target = $region24
        $region23: #{tpu_custom_call.1} parent=11 // pred_region
          _
        $region24: #{tpu_custom_call.1} parent=11 // pred_fallthru
          _
        // Predicated region
        $region25: #{tpu_custom_call.1} parent=11 // pred_check
          %p218 = pneg %p126
        $region26: #{tpu_custom_call.1} parent=11 // pred_check_branch
          %220 = sbr.rel (%p218) target = $region28
        $region27: #{tpu_custom_call.1} parent=11 // pred_region
          _
        $region28: #{tpu_custom_call.1} parent=11 // pred_fallthru
          _
        // Predicated region
        $region29: #{tpu_custom_call.1} parent=11 // pred_check
          %p221 = pneg %p147
        $region30: #{tpu_custom_call.1} parent=11 // pred_check_branch
          %223 = sbr.rel (%p221) target = $region32
        $region31: #{tpu_custom_call.1} parent=11 // pred_region
          _
        $region32: #{tpu_custom_call.1} parent=11 // pred_fallthru
          _
        // Predicated region
        $region33: #{tpu_custom_call.1} parent=11 // pred_check
          %p224 = pneg %p168
        $region34: #{tpu_custom_call.1} parent=11 // pred_check_branch
          %226 = sbr.rel (%p224) target = $region36
        $region35: #{tpu_custom_call.1} parent=11 // pred_region
          _
        $region36: #{tpu_custom_call.1} parent=11 // pred_fallthru
          _
      $region12: #{tpu_custom_call.1} parent=5 // pred_fallthru
        _
      %p227 = scmp.lt.s32.totalorder %s16, 2
      // Predicated region
      $region37: #{tpu_custom_call.1} parent=5 // pred_check
        %p228 = pneg %p227
      $region38: #{tpu_custom_call.1} parent=5 // pred_check_branch
        %230 = sbr.rel (%p228) target = $region40
      $region39: #{tpu_custom_call.1} parent=5 // pred_region
        // Predicated region
        $region41: #{tpu_custom_call.1} parent=39 // pred_check
          %p231 = pneg %p36
        $region42: #{tpu_custom_call.1} parent=39 // pred_check_branch
          %233 = sbr.rel (%p231) target = $region44
        $region43: #{tpu_custom_call.1} parent=39 // pred_region
          %p234 = scmp.lt.s32.totalorder %s16, 1
          %s235 = scalar_select %p234, %s16, 1
          %s236 = smul.addr %s235, 8
          %s237 = scalar_lea.vmem %s0, %s236
        $region44: #{tpu_custom_call.1} parent=39 // pred_fallthru
          _
      $region40: #{tpu_custom_call.1} parent=5 // pred_fallthru
        _
      %p238 = scmp.le.s32.totalorder 1, %s16
      %p239 = scmp.lt.s32.totalorder %s16, 3
      %p240 = pnand %p238, %p239
      %p241 = pneg %p240
      // Predicated region
      $region45: #{tpu_custom_call.1} parent=5 // pred_check
        _
      $region46: #{tpu_custom_call.1} parent=5 // pred_check_branch
        %243 = sbr.rel (%p240) target = $region48
      $region47: #{tpu_custom_call.1} parent=5 // pred_region
        %s244 = ssub.s32 %s16, 1
        %p245 = scmp.lt.s32.totalorder %s21, 1
        %s246 = scalar_select %p245, %s21, 1
        %s247 = smul.addr %s246, 8
        %s248 = scalar_lea.vmem %s0, %s247
        %p249 = pneg %p42
        %p250 = pneg %p39
        %p251 = pneg %p63
        %p252 = pneg %p60
        %p253 = pneg %p84
        %p254 = pneg %p81
        %p255 = pneg %p105
        %p256 = pneg %p102
        %p257 = pneg %p126
        %p258 = pneg %p123
        %p259 = pneg %p147
        %p260 = pneg %p144
        %p261 = pneg %p168
        %p262 = pneg %p165
        %p263 = pneg %p194
        %p264 = pneg %p191
        %s265 = sand.u32 %s181, 1
        %s266 = scalar_lea.sflag [#allocation3], %s265
        %s267 = sand.u32 %s181, 1
        %s268 = smul.addr %s267, 8
        %s269 = scalar_lea.vmem [#allocation2], %s268
        %p270 = scmp.lt.s32.totalorder %s21, 1
        %s271 = scalar_select %p270, %s21, 1
        %s272 = smul.addr %s271, 8
        %s273 = scalar_lea.vmem %s0, %s272
        %v274 = vld [vmem:[%s273] sm:$0xff]
        %v275 = vld [vmem:[%s1] sm:$0xff]
        %v276 = vld [vmem:[%s1 + $0x8] sm:$0xff]
        %v277 = vld [vmem:[%s1 + $0x10] sm:$0xff]
        %v278 = vld [vmem:[%s1 + $0x18] sm:$0xff]
        %v279 = vld [vmem:[%s2] sm:$0x1]
        %v281 = vlaneseq
        %v282 = vshrl.u32 %v281, 7
        %v283 = vsub.s32 0, %v282
        %v284 = vrot.slane %v279, %v283
        %vm286 = vcmask 261120
        %v288 = vsel %vm286, %v274, 0
        %290 = vmatprep.subr.mxu0 0.0
        %291 = vmatpush1.msra.mxu0 0.0
        %292 = vmatprep.subr.mxu0 0.0
        %293 = vmatpush1.msra.mxu0 0.0
        %294 = vmatprep.subr.mxu0 0.0
        %295 = vmatpush1.msra.mxu0 0.0
        %296 = vmatprep.subr.mxu0 0.0
        %297 = vmatpush1.msra.mxu0 0.0
        %298 = vmatprep.subr.mxu0 0.0
        %299 = vmatpush1.msra.mxu0 0.0
        %300 = vmatprep.subr.mxu0 0.0
        %301 = vmatpush1.msra.mxu0 0.0
        %302 = vmatprep.subr.mxu0 0.0
        %303 = vmatpush1.msra.mxu0 0.0
        %304 = vmatprep.subr.mxu0 0.0
        %305 = vmatpush1.msra.mxu0 0.0
        %306 = vmatprep.subr.mxu0 0.0
        %307 = vmatpush1.msra.mxu0 0.0
        %308 = vmatprep.subr.mxu0 0.0
        %309 = vmatpush1.msra.mxu0 0.0
        %310 = vmatprep.subr.mxu0 0.0
        %311 = vmatpush1.msra.mxu0 0.0
        %312 = vmatprep.subr.mxu0 0.0
        %313 = vmatpush1.msra.mxu0 0.0
        %314 = vmatprep.subr.mxu0 0.0
        %315 = vmatpush1.msra.mxu0 %v278
        %316 = vmatprep.subr.mxu0 0.0
        %317 = vmatpush1.msra.mxu0 %v277
        %318 = vmatprep.subr.mxu0 0.0
        %319 = vmatpush1.msra.mxu0 %v276
        %320 = vmatprep.subr.mxu0 0.0
        %321 = vmatpush1.msra.mxu0 %v275
        %322 = vmatprep.subr.mxu0 0.0
        %323 = vmatpush2.msra.mxu0 0.0
        %324 = vmatprep.subr.mxu0 0.0
        %325 = vmatpush2.msra.mxu0 0.0
        %326 = vmatprep.subr.mxu0 0.0
        %327 = vmatpush2.msra.mxu0 0.0
        %328 = vmatprep.subr.mxu0 0.0
        %329 = vmatpush2.msra.mxu0 0.0
        %330 = vmatprep.subr.mxu0 0.0
        %331 = vmatpush2.msra.mxu0 0.0
        %332 = vmatprep.subr.mxu0 0.0
        %333 = vmatpush2.msra.mxu0 0.0
        %334 = vmatprep.subr.mxu0 0.0
        %335 = vmatpush2.msra.mxu0 0.0
        %336 = vmatprep.subr.mxu0 0.0
        %337 = vmatpush2.msra.mxu0 0.0
        %338 = vmatprep.subr.mxu0 0.0
        %339 = vmatpush2.msra.mxu0 0.0
        %340 = vmatprep.subr.mxu0 0.0
        %341 = vmatpush2.msra.mxu0 0.0
        %342 = vmatprep.subr.mxu0 0.0
        %343 = vmatpush2.msra.mxu0 0.0
        %344 = vmatprep.subr.mxu0 0.0
        %345 = vmatpush2.msra.mxu0 0.0
        %346 = vmatprep.subr.mxu0 0.0
        %347 = vmatpush2.msra.mxu0 0.0
        %348 = vmatprep.subr.mxu0 0.0
        %349 = vmatpush2.msra.mxu0 0.0
        %350 = vmatprep.subr.mxu0 0.0
        %351 = vmatpush2.msra.mxu0 0.0
        %352 = vmatprep.subr.mxu0 0.0
        %353 = vmatpush2.msra.mxu0 0.0
        %354 = vmatprep.mubr.f32.mxu0 0.0
        %355 = vmatmul.mubr.f32.gmra.mxu0 %v288
        %v356 = vpop.f32.mrf.mxu0
        %v357 = vadd.f32 %v284, %v356
        %v358 = vpop.f32.mrf.mxu0
        %359 = vdwg.mxu0
        %v360 = vmax.f32 %v357, 0.0
        %v361 = vld [vmem:[%s3] sm:$0xff]
        %v362 = vld [vmem:[%s3 + $0x8] sm:$0xff]
        %v363 = vld [vmem:[%s3 + $0x10] sm:$0xff]
        %v364 = vld [vmem:[%s3 + $0x18] sm:$0xff]
        %v365 = vld [vmem:[%s3 + $0x20] sm:$0xff]
        %v366 = vld [vmem:[%s3 + $0x28] sm:$0xff]
        %v367 = vld [vmem:[%s3 + $0x30] sm:$0xff]
        %v368 = vld [vmem:[%s3 + $0x38] sm:$0xff]
        %v369 = vld [vmem:[%s3 + $0x40] sm:$0xff]
        %v370 = vld [vmem:[%s3 + $0x48] sm:$0xff]
        %v371 = vld [vmem:[%s3 + $0x50] sm:$0xff]
        %v372 = vld [vmem:[%s3 + $0x58] sm:$0xff]
        %v373 = vld [vmem:[%s3 + $0x60] sm:$0xff]
        %v374 = vld [vmem:[%s3 + $0x68] sm:$0xff]
        %v375 = vld [vmem:[%s3 + $0x70] sm:$0xff]
        %v376 = vld [vmem:[%s3 + $0x78] sm:$0xff]
        %v377 = vld [vmem:[%s4] sm:$0x1]
        %v379 = vlaneseq
        %v380 = vshrl.u32 %v379, 7
        %v381 = vsub.s32 0, %v380
        %v382 = vrot.slane %v377, %v381
        %384 = vmatprep.subr.mxu0 0.0
        %385 = vmatpush1.msra.mxu0 %v376
        %386 = vmatprep.subr.mxu0 0.0
        %387 = vmatpush1.msra.mxu0 %v375
        %388 = vmatprep.subr.mxu0 0.0
        %389 = vmatpush1.msra.mxu0 %v374
        %390 = vmatprep.subr.mxu0 0.0
        %391 = vmatpush1.msra.mxu0 %v373
        %392 = vmatprep.subr.mxu0 0.0
        %393 = vmatpush1.msra.mxu0 %v372
        %394 = vmatprep.subr.mxu0 0.0
        %395 = vmatpush1.msra.mxu0 %v371
        %396 = vmatprep.subr.mxu0 0.0
        %397 = vmatpush1.msra.mxu0 %v370
        %398 = vmatprep.subr.mxu0 0.0
        %399 = vmatpush1.msra.mxu0 %v369
        %400 = vmatprep.subr.mxu0 0.0
        %401 = vmatpush1.msra.mxu0 %v368
        %402 = vmatprep.subr.mxu0 0.0
        %403 = vmatpush1.msra.mxu0 %v367
        %404 = vmatprep.subr.mxu0 0.0
        %405 = vmatpush1.msra.mxu0 %v366
        %406 = vmatprep.subr.mxu0 0.0
        %407 = vmatpush1.msra.mxu0 %v365
        %408 = vmatprep.subr.mxu0 0.0
        %409 = vmatpush1.msra.mxu0 %v364
        %410 = vmatprep.subr.mxu0 0.0
        %411 = vmatpush1.msra.mxu0 %v363
        %412 = vmatprep.subr.mxu0 0.0
        %413 = vmatpush1.msra.mxu0 %v362
        %414 = vmatprep.subr.mxu0 0.0
        %415 = vmatpush1.msra.mxu0 %v361
        %416 = vmatprep.subr.mxu0 0.0
        %417 = vmatpush2.msra.mxu0 0.0
        %418 = vmatprep.subr.mxu0 0.0
        %419 = vmatpush2.msra.mxu0 0.0
        %420 = vmatprep.subr.mxu0 0.0
        %421 = vmatpush2.msra.mxu0 0.0
        %422 = vmatprep.subr.mxu0 0.0
        %423 = vmatpush2.msra.mxu0 0.0
        %424 = vmatprep.subr.mxu0 0.0
        %425 = vmatpush2.msra.mxu0 0.0
        %426 = vmatprep.subr.mxu0 0.0
        %427 = vmatpush2.msra.mxu0 0.0
        %428 = vmatprep.subr.mxu0 0.0
        %429 = vmatpush2.msra.mxu0 0.0
        %430 = vmatprep.subr.mxu0 0.0
        %431 = vmatpush2.msra.mxu0 0.0
        %432 = vmatprep.subr.mxu0 0.0
        %433 = vmatpush2.msra.mxu0 0.0
        %434 = vmatprep.subr.mxu0 0.0
        %435 = vmatpush2.msra.mxu0 0.0
        %436 = vmatprep.subr.mxu0 0.0
        %437 = vmatpush2.msra.mxu0 0.0
        %438 = vmatprep.subr.mxu0 0.0
        %439 = vmatpush2.msra.mxu0 0.0
        %440 = vmatprep.subr.mxu0 0.0
        %441 = vmatpush2.msra.mxu0 0.0
        %442 = vmatprep.subr.mxu0 0.0
        %443 = vmatpush2.msra.mxu0 0.0
        %444 = vmatprep.subr.mxu0 0.0
        %445 = vmatpush2.msra.mxu0 0.0
        %446 = vmatprep.subr.mxu0 0.0
        %447 = vmatpush2.msra.mxu0 0.0
        %448 = vmatprep.mubr.f32.mxu0 0.0
        %449 = vmatmul.mubr.f32.gmra.mxu0 %v360
        %v450 = vpop.f32.mrf.mxu0
        %v451 = vadd.f32 %v382, %v450
        %v452 = vpop.f32.mrf.mxu0
        %453 = vdwg.mxu0
        %v454 = vadd.f32 %v451, %v274
        %v455 = vld [vmem:[%s5] sm:$0x1]
        %v456 = vld [vmem:[%s6] sm:$0x1]
        %v457 = vsel %vm286, %v454, 0.0
        %458 = vadd.xlane.f32.xlu0 %v457
        %v459 = vpop.xlane.xlu0 %458
        %v460 = vmul.f32 %v459, 0.03125
        %v461 = vsub.f32 %v454, %v460
        %v462 = vmul.f32 %v461, %v461
        %v463 = vsel %vm286, %v462, 0.0
        %464 = vadd.xlane.f32.xlu0 %v463
        %v465 = vpop.xlane.xlu0 %464
        %v466 = vmul.f32 %v465, 0.03125
        %v467 = vadd.f32 %v466, 1e-06
        %v468 = vrsqrt.pop %v467
        %v469 = vmul.f32 %v461, %v468
        %v471 = vlaneseq
        %v472 = vshrl.u32 %v471, 7
        %v473 = vsub.s32 0, %v472
        %v474 = vrot.slane %v455, %v473
        %v476 = vmul.f32 %v469, %v474
        %v478 = vlaneseq
        %v479 = vshrl.u32 %v478, 7
        %v480 = vsub.s32 0, %v479
        %v481 = vrot.slane %v456, %v480
        %v483 = vadd.f32 %v476, %v481
        %484 = vst.msk [vmem:[%s269] sm:$0xff] %vm286, %v483
        %s485 = sand.u32 %s181, 1
        %s486 = scalar_lea.sflag [#allocation3], %s485
        %s487 = sand.u32 %s181, 1
        %s488 = smul.addr %s487, 8
        %s489 = scalar_lea.vmem [#allocation2], %s488
        // Predicated region
        $region49: #{tpu_custom_call.1} parent=47 // pred_check
          %p490 = pneg %p191
        $region50: #{tpu_custom_call.1} parent=47 // pred_check_branch
          %492 = sbr.rel (%p490) target = $region52
        $region51: #{tpu_custom_call.1} parent=47 // pred_region
          %s494 = ssub.s32 128, 128
          %495 = vsyncadd %s486, %s494
          %s496 = smul.addr %s21, 128
          %s497 = scalar_lea.hbm %s7, %s496
          %s499 = sshll.u32 %s489, 4
          %s500 = int_to_ptr.vmem [resolvable:$true] %s499
          %502 = dma.vmem_to_hbm [thread:$0]  %s500, 128, %s497, %s486
        $region52: #{tpu_custom_call.1} parent=47 // pred_fallthru
          _
      $region48: #{tpu_custom_call.1} parent=5 // pred_fallthru
        _
      %p503 = scmp.le.s32.totalorder 2, %s16
      // Predicated region
      $region53: #{tpu_custom_call.1} parent=5 // pred_check
        %p504 = pneg %p503
      $region54: #{tpu_custom_call.1} parent=5 // pred_check_branch
        %506 = sbr.rel (%p504) target = $region56
      $region55: #{tpu_custom_call.1} parent=5 // pred_region
        %s507 = ssub.s32 %s16, 2
        // Predicated region
        $region57: #{tpu_custom_call.1} parent=55 // pred_check
          %p508 = pneg %p197
        $region58: #{tpu_custom_call.1} parent=55 // pred_check_branch
          %510 = sbr.rel (%p508) target = $region60
        $region59: #{tpu_custom_call.1} parent=55 // pred_region
          %s511 = sand.u32 %s182, 1
          %s512 = scalar_lea.sflag [#allocation3], %s511
          %s513 = sand.u32 %s182, 1
          %s514 = smul.addr %s513, 8
          %s515 = scalar_lea.vmem [#allocation2], %s514
          %516 = dma.done %s512, 128
        $region60: #{tpu_custom_call.1} parent=55 // pred_fallthru
          _
      $region56: #{tpu_custom_call.1} parent=5 // pred_fallthru
        _
    $region6: #{tpu_custom_call.1} parent=1 // loop_footer
      %s20 = sadd.s32 1, %s16
    $region7: #{tpu_custom_call.1} parent=1 // loop_footer_branch
      %15 = sbr.rel target = $region3
    $region8: #{tpu_custom_call.1} parent=1 // loop_exit
      _
    %517 = vsyncpa [#allocation3], 1
    %s518 = scalar_lea.sflag [#allocation3], 1
    %519 = vsyncpa %s518, 1

</llo_original>
